<compile_context>
chip_gen: v7x
topology: tpu7x:2x2x1
jax: 0.10.0
libtpu: 0.0.40
codegen_flags: <defaults>
</compile_context>

<pallas_src>
import jax
import jax.numpy as jnp
from jax.experimental import pallas as pl
from jax.experimental.pallas import tpu as pltpu


def _round_up(n, m):
    return ((n + m - 1) // m) * m


def _regressor_kernel(x_ref, w1_ref, b1_ref, w2_ref, b2_ref, w3_ref, b3_ref,
                      o_ref):
    # x_ref : (1, 1, tm)   batch on the lane axis (lane-dense load)
    # w1/b1/b2/w3 : (H, 1) columns;  w2_ref : (H, H) pre-transposed;  b3 : (1, 1)
    x_row = x_ref[0]                                        # (1, tm)

    # Layer 1: Linear(1, H) + Tanh -- K=1 contraction done on the VPU.
    h1 = jnp.tanh(w1_ref[...] * x_row + b1_ref[...])        # (H, tm)

    # Layer 2: Linear(H, H) + Tanh -- the only real MXU matmul (f32 accum).
    h2 = jnp.dot(w2_ref[...], h1, preferred_element_type=jnp.float32)
    h2 = jnp.tanh(h2 + b2_ref[...])                         # (H, tm)

    # Layer 3: Linear(H, 1) -- VPU mul + XLU sublane reduction; result is
    # already lane-dense (1, tm), so the store is an unmasked dense vst.
    out_row = jnp.sum(h2 * w3_ref[...], axis=0, keepdims=True) + b3_ref[...]
    o_ref[...] = out_row.reshape(o_ref.shape).astype(o_ref.dtype)


def regressor_forward(x, params, *, tm=None):
    """x: (N, 1) float32. params: dict of w1,b1,w2,b2,w3,b3 (feature-last)."""
    N = x.shape[0]
    H = params["w1"].shape[1]

    # Fat batch tiles: few grid steps, batch lands on the lane axis.
    if tm is None:
        tm = min(1024, _round_up(N, 128))
    else:
        tm = _round_up(tm, 128)

    n_pad = _round_up(N, tm)
    grid_n = n_pad // tm

    # Lane-dense batch layout: (grid_n, 1, tm); pad ragged batch sizes.
    x_flat = x.reshape(N).astype(jnp.float32)
    if n_pad != N:
        x_flat = jnp.pad(x_flat, (0, n_pad - N))
    x_tiles = x_flat.reshape(grid_n, 1, tm)

    # Transposed parameter layout (features on sublanes). All reshapes /
    # transposes here are free wrapper-side layout plumbing.
    w1c = params["w1"].reshape(H, 1)          # (H, 1)
    b1c = params["b1"].reshape(H, 1)          # (H, 1)
    w2t = params["w2"].T                      # (H, H)  [out, in]
    b2c = params["b2"].reshape(H, 1)          # (H, 1)
    w3c = params["w3"].reshape(H, 1)          # (H, 1)
    b3c = params["b3"].reshape(1, 1)          # (1, 1)

    def bcast(shape):
        return pl.BlockSpec(shape, lambda i: (0,) * len(shape))

    cost = pl.CostEstimate(
        flops=int(2 * n_pad * H * H + 4 * n_pad * H),
        transcendentals=int(2 * n_pad * H),       # tanh is the binding slot
        bytes_accessed=int(4 * (2 * n_pad + H * H + 4 * H + 1)),
    )

    out = pl.pallas_call(
        _regressor_kernel,
        out_shape=jax.ShapeDtypeStruct((grid_n, 1, tm), jnp.float32),
        grid_spec=pltpu.PrefetchScalarGridSpec(
            num_scalar_prefetch=0,
            grid=(grid_n,),
            in_specs=[
                pl.BlockSpec((1, 1, tm), lambda i: (i, 0, 0)),   # x tile
                bcast((H, 1)),                                   # w1 column
                bcast((H, 1)),                                   # b1 column
                bcast((H, H)),                                   # w2^T (resident)
                bcast((H, 1)),                                   # b2 column
                bcast((H, 1)),                                   # w3 column
                bcast((1, 1)),                                   # b3
            ],
            out_specs=pl.BlockSpec((1, 1, tm), lambda i: (i, 0, 0)),
        ),
        compiler_params=pltpu.CompilerParams(
            dimension_semantics=("parallel",)),
        cost_estimate=cost,
    )(x_tiles, w1c, b1c, w2t, b2c, w3c, b3c)

    return out.reshape(n_pad, 1)[:N]


def init_params(key, hidden_size=128):
    """Deterministic init mimicking nn.Linear's U(-1/sqrt(fan_in), 1/sqrt(fan_in))."""
    ks = jax.random.split(key, 6)

    def uniform(k, shape, fan_in):
        bound = 1.0 / jnp.sqrt(jnp.float32(fan_in))
        return jax.random.uniform(k, shape, jnp.float32, -bound, bound)

    H = hidden_size
    return {
        "w1": uniform(ks[0], (1, H), 1),
        "b1": uniform(ks[1], (H,), 1),
        "w2": uniform(ks[2], (H, H), H),
        "b2": uniform(ks[3], (H,), H),
        "w3": uniform(ks[4], (H, 1), H),
        "b3": uniform(ks[5], (1,), H),
    }


def reference_forward(x, p):
    h1 = jnp.tanh(x @ p["w1"] + p["b1"])
    h2 = jnp.tanh(h1 @ p["w2"] + p["b2"])
    return h2 @ p["w3"] + p["b3"]


if __name__ == "__main__":
    key = jax.random.PRNGKey(0)
    k_param, k_x = jax.random.split(key)

    hidden_size = 128
    params = init_params(k_param, hidden_size)

    # N=256 exercises the single-fat-tile path; N=300 exercises padding.
    for N in (256, 300):
        kx = jax.random.fold_in(k_x, N)
        x = jax.random.normal(kx, (N, 1), jnp.float32)

        out = jax.block_until_ready(regressor_forward(x, params))
        ref = reference_forward(x, params)

        assert out.shape == (N, 1)
        assert jnp.allclose(out, ref, atol=1e-5, rtol=1e-5), f"mismatch at N={N}"

    print("KERNEL_OK")
</pallas_src>

<mosaic_0001>
module attributes {stable_mosaic.version = 11 : i64} {
  func.func @_regressor_kernel(%arg0: i32, %arg1: memref<1x1x256xf32, #tpu.memory_space<vmem>>, %arg2: memref<128x1xf32, #tpu.memory_space<vmem>>, %arg3: memref<128x1xf32, #tpu.memory_space<vmem>>, %arg4: memref<128x128xf32, #tpu.memory_space<vmem>>, %arg5: memref<128x1xf32, #tpu.memory_space<vmem>>, %arg6: memref<128x1xf32, #tpu.memory_space<vmem>>, %arg7: memref<1x1xf32, #tpu.memory_space<vmem>>, %arg8: memref<1x1x256xf32, #tpu.memory_space<vmem>>) attributes {dimension_semantics = [#tpu.dimension_semantics<parallel>], iteration_bounds = array<i64: 1>, scalar_prefetch = 0 : i64, scratch_operands = 0 : i64, tpu.core_type = #tpu.core_type<tc>, window_params = [{transform_indices = @transform_0, window_bounds = array<i64: 1, 1, 256>}, {pipeline_mode = #tpu.pipeline_mode<synchronous>, transform_indices = @transform_1, window_bounds = array<i64: 128, 1>}, {pipeline_mode = #tpu.pipeline_mode<synchronous>, transform_indices = @transform_2, window_bounds = array<i64: 128, 1>}, {pipeline_mode = #tpu.pipeline_mode<synchronous>, transform_indices = @transform_3, window_bounds = array<i64: 128, 128>}, {pipeline_mode = #tpu.pipeline_mode<synchronous>, transform_indices = @transform_4, window_bounds = array<i64: 128, 1>}, {pipeline_mode = #tpu.pipeline_mode<synchronous>, transform_indices = @transform_5, window_bounds = array<i64: 128, 1>}, {pipeline_mode = #tpu.pipeline_mode<synchronous>, transform_indices = @transform_6, window_bounds = array<i64: 1, 1>}, {transform_indices = @transform_7, window_bounds = array<i64: 1, 1, 256>}]} {
    %c0 = arith.constant 0 : index
    %c0_0 = arith.constant 0 : index
    %c0_1 = arith.constant 0 : index
    %0 = vector.load %arg1[%c0, %c0_0, %c0_1] : memref<1x1x256xf32, #tpu.memory_space<vmem>>, vector<1x1x256xf32>
    %1 = vector.shape_cast %0 : vector<1x1x256xf32> to vector<1x256xf32>
    %c0_2 = arith.constant 0 : index
    %c0_3 = arith.constant 0 : index
    %2 = vector.load %arg2[%c0_2, %c0_3] : memref<128x1xf32, #tpu.memory_space<vmem>>, vector<128x1xf32>
    %3 = vector.broadcast %2 : vector<128x1xf32> to vector<128x256xf32>
    %4 = vector.broadcast %1 : vector<1x256xf32> to vector<128x256xf32>
    %5 = arith.mulf %3, %4 : vector<128x256xf32>
    %c0_4 = arith.constant 0 : index
    %c0_5 = arith.constant 0 : index
    %6 = vector.load %arg3[%c0_4, %c0_5] : memref<128x1xf32, #tpu.memory_space<vmem>>, vector<128x1xf32>
    %7 = vector.broadcast %6 : vector<128x1xf32> to vector<128x256xf32>
    %8 = arith.addf %5, %7 : vector<128x256xf32>
    %9 = math.tanh %8 : vector<128x256xf32>
    %c0_6 = arith.constant 0 : index
    %c0_7 = arith.constant 0 : index
    %10 = vector.load %arg4[%c0_6, %c0_7] : memref<128x128xf32, #tpu.memory_space<vmem>>, vector<128x128xf32>
    %cst = arith.constant dense<0.000000e+00> : vector<128x256xf32>
    %11 = tpu.matmul %10, %9, %cst {dimension_numbers = #tpu.dot_dimension_numbers<[1], [0], [0], [1], [0, 0, 1, 1], [], []>} : vector<128x128xf32>, vector<128x256xf32>, vector<128x256xf32> -> vector<128x256xf32>
    %c0_8 = arith.constant 0 : index
    %c0_9 = arith.constant 0 : index
    %12 = vector.load %arg5[%c0_8, %c0_9] : memref<128x1xf32, #tpu.memory_space<vmem>>, vector<128x1xf32>
    %13 = vector.broadcast %12 : vector<128x1xf32> to vector<128x256xf32>
    %14 = arith.addf %11, %13 : vector<128x256xf32>
    %15 = math.tanh %14 : vector<128x256xf32>
    %c0_10 = arith.constant 0 : index
    %c0_11 = arith.constant 0 : index
    %16 = vector.load %arg6[%c0_10, %c0_11] : memref<128x1xf32, #tpu.memory_space<vmem>>, vector<128x1xf32>
    %17 = vector.broadcast %16 : vector<128x1xf32> to vector<128x256xf32>
    %18 = arith.mulf %15, %17 : vector<128x256xf32>
    %cst_12 = arith.constant dense<0.000000e+00> : vector<256xf32>
    %19 = vector.multi_reduction <add>, %18, %cst_12 [0] : vector<128x256xf32> to vector<256xf32>
    %20 = vector.shape_cast %19 : vector<256xf32> to vector<1x256xf32>
    %c0_13 = arith.constant 0 : index
    %c0_14 = arith.constant 0 : index
    %21 = vector.load %arg7[%c0_13, %c0_14] : memref<1x1xf32, #tpu.memory_space<vmem>>, vector<1x1xf32>
    %22 = vector.broadcast %21 : vector<1x1xf32> to vector<1x256xf32>
    %23 = arith.addf %20, %22 : vector<1x256xf32>
    %24 = vector.shape_cast %23 : vector<1x256xf32> to vector<1x1x256xf32>
    %c0_15 = arith.constant 0 : index
    %c0_16 = arith.constant 0 : index
    %c0_17 = arith.constant 0 : index
    %25 = vector.load %arg8[%c0_15, %c0_16, %c0_17] : memref<1x1x256xf32, #tpu.memory_space<vmem>>, vector<1x1x256xf32>
    tpu.vector_store %arg8[%c0_15, %c0_16, %c0_17], %24 {strides = array<i32>} : memref<1x1x256xf32, #tpu.memory_space<vmem>>, vector<1x1x256xf32>,
    return
  }
  func.func @transform_0(%arg0: i32) -> (i32, i32, i32) {
    %c0_i32 = arith.constant 0 : i32
    %c0_i32_0 = arith.constant 0 : i32
    %c0_i32_1 = arith.constant 0 : i32
    return %arg0, %c0_i32, %c0_i32_0 : i32, i32, i32
  }
  func.func @transform_1(%arg0: i32) -> (i32, i32) {
    %c0_i32 = arith.constant 0 : i32
    %c0_i32_0 = arith.constant 0 : i32
    %c0_i32_1 = arith.constant 0 : i32
    return %c0_i32, %c0_i32_0 : i32, i32
  }
  func.func @transform_2(%arg0: i32) -> (i32, i32) {
    %c0_i32 = arith.constant 0 : i32
    %c0_i32_0 = arith.constant 0 : i32
    %c0_i32_1 = arith.constant 0 : i32
    return %c0_i32, %c0_i32_0 : i32, i32
  }
  func.func @transform_3(%arg0: i32) -> (i32, i32) {
    %c0_i32 = arith.constant 0 : i32
    %c0_i32_0 = arith.constant 0 : i32
    %c0_i32_1 = arith.constant 0 : i32
    return %c0_i32, %c0_i32_0 : i32, i32
  }
  func.func @transform_4(%arg0: i32) -> (i32, i32) {
    %c0_i32 = arith.constant 0 : i32
    %c0_i32_0 = arith.constant 0 : i32
    %c0_i32_1 = arith.constant 0 : i32
    return %c0_i32, %c0_i32_0 : i32, i32
  }
  func.func @transform_5(%arg0: i32) -> (i32, i32) {
    %c0_i32 = arith.constant 0 : i32
    %c0_i32_0 = arith.constant 0 : i32
    %c0_i32_1 = arith.constant 0 : i32
    return %c0_i32, %c0_i32_0 : i32, i32
  }
  func.func @transform_6(%arg0: i32) -> (i32, i32) {
    %c0_i32 = arith.constant 0 : i32
    %c0_i32_0 = arith.constant 0 : i32
    %c0_i32_1 = arith.constant 0 : i32
    return %c0_i32, %c0_i32_0 : i32, i32
  }
  func.func @transform_7(%arg0: i32) -> (i32, i32, i32) {
    %c0_i32 = arith.constant 0 : i32
    %c0_i32_0 = arith.constant 0 : i32
    %c0_i32_1 = arith.constant 0 : i32
    return %arg0, %c0_i32, %c0_i32_0 : i32, i32, i32
  }
}

</mosaic_0001>

<llo_original>
// kernel: tpu_custom_call.1
$region0: #{tpu_custom_call.1}
  #allocation0 [shape = 'u32[]', space=smem, size = 0x4, offset = 0x4, fixed_abs, tag = 'smem constant byte address 0x4 - core index']
  #allocation1 [shape = 'u32[144,128]{1,0:T(1,128)}', space=vmem, size = 0x12000, scoped, tag = 'internal scratch']
  #allocation2 [shape = 'f32[1,1]{1,0:T(1,128)S(1)}', space=vmem, size = 0x200, scoped, tag = 'scoped memory for tpu_custom_call.1']
  %s0 = inlined_call_operand.vmem [shape: f32[1,1,256], index: 0, kind: input, shape index: {}]
  %s1 = inlined_call_operand.vmem [shape: f32[128,1], index: 1, kind: input, shape index: {}]
  %s2 = inlined_call_operand.vmem [shape: f32[128,1], index: 2, kind: input, shape index: {}]
  %s3 = inlined_call_operand.vmem [shape: f32[128,128], index: 3, kind: input, shape index: {}]
  %s4 = inlined_call_operand.vmem [shape: f32[128,1], index: 4, kind: input, shape index: {}]
  %s5 = inlined_call_operand.vmem [shape: f32[128,1], index: 5, kind: input, shape index: {}]
  %s6 = inlined_call_operand.<no memory space> [shape: f32[1,1], index: 6, kind: input, shape index: {}]
  %s7 = inlined_call_operand.hbm [shape: f32[1,1,256], index: 7, kind: output, shape index: {}]
  %s8 = sld [smem:[#allocation0]]
  $region38: #{tpu_custom_call.1} parent=0
    _
  %s10 = ssub.s32 1, %s8
  %s11 = scalar_select 0, %s10, %s8
  %v12 = vstv %s6
  %13 = vst [vmem:[#allocation2] sm:$0x1] %v12
  $region1: #{tpu_custom_call.1} parent=0
    #allocation3 [shape = 'u8[1024]{0}', space=vmem, size = 0x400, scoped, tag = 'output window, operand 0, single buffered']
    #allocation4 [shape = 's32[1]{0}', space=sflag, size = 0x4, scoped, tag = 'scoped memory for tpu_custom_call.1']
    %14 = vsyncpa [#allocation4], 0
    // Predicated region
    $region2: #{tpu_custom_call.1} parent=1 // pred_check
      _
    $region3: #{tpu_custom_call.1} parent=1 // pred_check_branch
      %16 = sbr.rel (0) target = $region5
    $region4: #{tpu_custom_call.1} parent=1 // pred_region
      _
    $region5: #{tpu_custom_call.1} parent=1 // pred_fallthru
      _
    // Predicated region
    $region6: #{tpu_custom_call.1} parent=1 // pred_check
      _
    $region7: #{tpu_custom_call.1} parent=1 // pred_check_branch
      %18 = sbr.rel (0) target = $region9
    $region8: #{tpu_custom_call.1} parent=1 // pred_region
      _
    $region9: #{tpu_custom_call.1} parent=1 // pred_fallthru
      _
    // Predicated region
    $region10: #{tpu_custom_call.1} parent=1 // pred_check
      _
    $region11: #{tpu_custom_call.1} parent=1 // pred_check_branch
      %20 = sbr.rel (0) target = $region13
    $region12: #{tpu_custom_call.1} parent=1 // pred_region
      _
    $region13: #{tpu_custom_call.1} parent=1 // pred_fallthru
      _
    // Predicated region
    $region14: #{tpu_custom_call.1} parent=1 // pred_check
      _
    $region15: #{tpu_custom_call.1} parent=1 // pred_check_branch
      %22 = sbr.rel (0) target = $region17
    $region16: #{tpu_custom_call.1} parent=1 // pred_region
      _
    $region17: #{tpu_custom_call.1} parent=1 // pred_fallthru
      _
    // Predicated region
    $region18: #{tpu_custom_call.1} parent=1 // pred_check
      _
    $region19: #{tpu_custom_call.1} parent=1 // pred_check_branch
      %24 = sbr.rel (0) target = $region21
    $region20: #{tpu_custom_call.1} parent=1 // pred_region
      _
    $region21: #{tpu_custom_call.1} parent=1 // pred_fallthru
      _
    // Predicated region
    $region22: #{tpu_custom_call.1} parent=1 // pred_check
      _
    $region23: #{tpu_custom_call.1} parent=1 // pred_check_branch
      %26 = sbr.rel (0) target = $region25
    $region24: #{tpu_custom_call.1} parent=1 // pred_region
      _
    $region25: #{tpu_custom_call.1} parent=1 // pred_fallthru
      _
    // Predicated region
    $region26: #{tpu_custom_call.1} parent=1 // pred_check
      _
    $region27: #{tpu_custom_call.1} parent=1 // pred_check_branch
      %28 = sbr.rel (0) target = $region29
    $region28: #{tpu_custom_call.1} parent=1 // pred_region
      _
    $region29: #{tpu_custom_call.1} parent=1 // pred_fallthru
      _
    %v29 = vld [vmem:[%s0] sm:$0x3]
    %v30 = vld [vmem:[%s1] sm:$0xff]
    %v31 = vld [vmem:[%s1 + $0x8] sm:$0xff]
    %v32 = vld [vmem:[%s1 + $0x10] sm:$0xff]
    %v33 = vld [vmem:[%s1 + $0x18] sm:$0xff]
    %v34 = vld [vmem:[%s1 + $0x20] sm:$0xff]
    %v35 = vld [vmem:[%s1 + $0x28] sm:$0xff]
    %v36 = vld [vmem:[%s1 + $0x30] sm:$0xff]
    %v37 = vld [vmem:[%s1 + $0x38] sm:$0xff]
    %v38 = vld [vmem:[%s1 + $0x40] sm:$0xff]
    %v39 = vld [vmem:[%s1 + $0x48] sm:$0xff]
    %v40 = vld [vmem:[%s1 + $0x50] sm:$0xff]
    %v41 = vld [vmem:[%s1 + $0x58] sm:$0xff]
    %v42 = vld [vmem:[%s1 + $0x60] sm:$0xff]
    %v43 = vld [vmem:[%s1 + $0x68] sm:$0xff]
    %v44 = vld [vmem:[%s1 + $0x70] sm:$0xff]
    %v45 = vld [vmem:[%s1 + $0x78] sm:$0xff]
    %47 = vset.pattern.permute.xlu0 0
    %48 = vperm.xlu0 %47, %v30
    %v49 = vpop.permute.xlu0 %48
    %52 = vset.pattern.permute.xlu0 0
    %53 = vperm.xlu0 %52, %v31
    %v54 = vpop.permute.xlu0 %53
    %57 = vset.pattern.permute.xlu0 0
    %58 = vperm.xlu0 %57, %v32
    %v59 = vpop.permute.xlu0 %58
    %62 = vset.pattern.permute.xlu0 0
    %63 = vperm.xlu0 %62, %v33
    %v64 = vpop.permute.xlu0 %63
    %67 = vset.pattern.permute.xlu0 0
    %68 = vperm.xlu0 %67, %v34
    %v69 = vpop.permute.xlu0 %68
    %72 = vset.pattern.permute.xlu0 0
    %73 = vperm.xlu0 %72, %v35
    %v74 = vpop.permute.xlu0 %73
    %77 = vset.pattern.permute.xlu0 0
    %78 = vperm.xlu0 %77, %v36
    %v79 = vpop.permute.xlu0 %78
    %82 = vset.pattern.permute.xlu0 0
    %83 = vperm.xlu0 %82, %v37
    %v84 = vpop.permute.xlu0 %83
    %87 = vset.pattern.permute.xlu0 0
    %88 = vperm.xlu0 %87, %v38
    %v89 = vpop.permute.xlu0 %88
    %92 = vset.pattern.permute.xlu0 0
    %93 = vperm.xlu0 %92, %v39
    %v94 = vpop.permute.xlu0 %93
    %97 = vset.pattern.permute.xlu0 0
    %98 = vperm.xlu0 %97, %v40
    %v99 = vpop.permute.xlu0 %98
    %102 = vset.pattern.permute.xlu0 0
    %103 = vperm.xlu0 %102, %v41
    %v104 = vpop.permute.xlu0 %103
    %107 = vset.pattern.permute.xlu0 0
    %108 = vperm.xlu0 %107, %v42
    %v109 = vpop.permute.xlu0 %108
    %112 = vset.pattern.permute.xlu0 0
    %113 = vperm.xlu0 %112, %v43
    %v114 = vpop.permute.xlu0 %113
    %117 = vset.pattern.permute.xlu0 0
    %118 = vperm.xlu0 %117, %v44
    %v119 = vpop.permute.xlu0 %118
    %122 = vset.pattern.permute.xlu0 0
    %123 = vperm.xlu0 %122, %v45
    %v124 = vpop.permute.xlu0 %123
    %v127 = vlaneseq
    %v128 = vshrl.u32 %v127, 7
    %v129 = vsub.s32 0, %v128
    %v130 = vrot.slane %v29, %v129
    %v131 = vlaneseq
    %v132 = vshrl.u32 %v131, 7
    %v133 = vsub.s32 1, %v132
    %v134 = vrot.slane %v29, %v133
    %v137 = vmul.f32 %v49, %v130
    %v138 = vmul.f32 %v49, %v134
    %v139 = vmul.f32 %v54, %v130
    %v140 = vmul.f32 %v54, %v134
    %v141 = vmul.f32 %v59, %v130
    %v142 = vmul.f32 %v59, %v134
    %v143 = vmul.f32 %v64, %v130
    %v144 = vmul.f32 %v64, %v134
    %v145 = vmul.f32 %v69, %v130
    %v146 = vmul.f32 %v69, %v134
    %v147 = vmul.f32 %v74, %v130
    %v148 = vmul.f32 %v74, %v134
    %v149 = vmul.f32 %v79, %v130
    %v150 = vmul.f32 %v79, %v134
    %v151 = vmul.f32 %v84, %v130
    %v152 = vmul.f32 %v84, %v134
    %v153 = vmul.f32 %v89, %v130
    %v154 = vmul.f32 %v89, %v134
    %v155 = vmul.f32 %v94, %v130
    %v156 = vmul.f32 %v94, %v134
    %v157 = vmul.f32 %v99, %v130
    %v158 = vmul.f32 %v99, %v134
    %v159 = vmul.f32 %v104, %v130
    %v160 = vmul.f32 %v104, %v134
    %v161 = vmul.f32 %v109, %v130
    %v162 = vmul.f32 %v109, %v134
    %v163 = vmul.f32 %v114, %v130
    %v164 = vmul.f32 %v114, %v134
    %v165 = vmul.f32 %v119, %v130
    %v166 = vmul.f32 %v119, %v134
    %v167 = vmul.f32 %v124, %v130
    %v168 = vmul.f32 %v124, %v134
    %v169 = vld [vmem:[%s2] sm:$0xff]
    %v170 = vld [vmem:[%s2 + $0x8] sm:$0xff]
    %v171 = vld [vmem:[%s2 + $0x10] sm:$0xff]
    %v172 = vld [vmem:[%s2 + $0x18] sm:$0xff]
    %v173 = vld [vmem:[%s2 + $0x20] sm:$0xff]
    %v174 = vld [vmem:[%s2 + $0x28] sm:$0xff]
    %v175 = vld [vmem:[%s2 + $0x30] sm:$0xff]
    %v176 = vld [vmem:[%s2 + $0x38] sm:$0xff]
    %v177 = vld [vmem:[%s2 + $0x40] sm:$0xff]
    %v178 = vld [vmem:[%s2 + $0x48] sm:$0xff]
    %v179 = vld [vmem:[%s2 + $0x50] sm:$0xff]
    %v180 = vld [vmem:[%s2 + $0x58] sm:$0xff]
    %v181 = vld [vmem:[%s2 + $0x60] sm:$0xff]
    %v182 = vld [vmem:[%s2 + $0x68] sm:$0xff]
    %v183 = vld [vmem:[%s2 + $0x70] sm:$0xff]
    %v184 = vld [vmem:[%s2 + $0x78] sm:$0xff]
    %186 = vset.pattern.permute.xlu0 0
    %187 = vperm.xlu0 %186, %v169
    %v188 = vpop.permute.xlu0 %187
    %191 = vset.pattern.permute.xlu0 0
    %192 = vperm.xlu0 %191, %v170
    %v193 = vpop.permute.xlu0 %192
    %196 = vset.pattern.permute.xlu0 0
    %197 = vperm.xlu0 %196, %v171
    %v198 = vpop.permute.xlu0 %197
    %201 = vset.pattern.permute.xlu0 0
    %202 = vperm.xlu0 %201, %v172
    %v203 = vpop.permute.xlu0 %202
    %206 = vset.pattern.permute.xlu0 0
    %207 = vperm.xlu0 %206, %v173
    %v208 = vpop.permute.xlu0 %207
    %211 = vset.pattern.permute.xlu0 0
    %212 = vperm.xlu0 %211, %v174
    %v213 = vpop.permute.xlu0 %212
    %216 = vset.pattern.permute.xlu0 0
    %217 = vperm.xlu0 %216, %v175
    %v218 = vpop.permute.xlu0 %217
    %221 = vset.pattern.permute.xlu0 0
    %222 = vperm.xlu0 %221, %v176
    %v223 = vpop.permute.xlu0 %222
    %226 = vset.pattern.permute.xlu0 0
    %227 = vperm.xlu0 %226, %v177
    %v228 = vpop.permute.xlu0 %227
    %231 = vset.pattern.permute.xlu0 0
    %232 = vperm.xlu0 %231, %v178
    %v233 = vpop.permute.xlu0 %232
    %236 = vset.pattern.permute.xlu0 0
    %237 = vperm.xlu0 %236, %v179
    %v238 = vpop.permute.xlu0 %237
    %241 = vset.pattern.permute.xlu0 0
    %242 = vperm.xlu0 %241, %v180
    %v243 = vpop.permute.xlu0 %242
    %246 = vset.pattern.permute.xlu0 0
    %247 = vperm.xlu0 %246, %v181
    %v248 = vpop.permute.xlu0 %247
    %251 = vset.pattern.permute.xlu0 0
    %252 = vperm.xlu0 %251, %v182
    %v253 = vpop.permute.xlu0 %252
    %256 = vset.pattern.permute.xlu0 0
    %257 = vperm.xlu0 %256, %v183
    %v258 = vpop.permute.xlu0 %257
    %261 = vset.pattern.permute.xlu0 0
    %262 = vperm.xlu0 %261, %v184
    %v263 = vpop.permute.xlu0 %262
    %v265 = vadd.f32 %v137, %v188
    %v266 = vadd.f32 %v138, %v188
    %v267 = vadd.f32 %v139, %v193
    %v268 = vadd.f32 %v140, %v193
    %v269 = vadd.f32 %v141, %v198
    %v270 = vadd.f32 %v142, %v198
    %v271 = vadd.f32 %v143, %v203
    %v272 = vadd.f32 %v144, %v203
    %v273 = vadd.f32 %v145, %v208
    %v274 = vadd.f32 %v146, %v208
    %v275 = vadd.f32 %v147, %v213
    %v276 = vadd.f32 %v148, %v213
    %v277 = vadd.f32 %v149, %v218
    %v278 = vadd.f32 %v150, %v218
    %v279 = vadd.f32 %v151, %v223
    %v280 = vadd.f32 %v152, %v223
    %v281 = vadd.f32 %v153, %v228
    %v282 = vadd.f32 %v154, %v228
    %v283 = vadd.f32 %v155, %v233
    %v284 = vadd.f32 %v156, %v233
    %v285 = vadd.f32 %v157, %v238
    %v286 = vadd.f32 %v158, %v238
    %v287 = vadd.f32 %v159, %v243
    %v288 = vadd.f32 %v160, %v243
    %v289 = vadd.f32 %v161, %v248
    %v290 = vadd.f32 %v162, %v248
    %v291 = vadd.f32 %v163, %v253
    %v292 = vadd.f32 %v164, %v253
    %v293 = vadd.f32 %v165, %v258
    %v294 = vadd.f32 %v166, %v258
    %v295 = vadd.f32 %v167, %v263
    %v296 = vadd.f32 %v168, %v263
    %v297 = vtanh.pop %v265
    %v298 = vtanh.pop %v266
    %v299 = vtanh.pop %v267
    %v300 = vtanh.pop %v268
    %v301 = vtanh.pop %v269
    %v302 = vtanh.pop %v270
    %v303 = vtanh.pop %v271
    %v304 = vtanh.pop %v272
    %v305 = vtanh.pop %v273
    %v306 = vtanh.pop %v274
    %v307 = vtanh.pop %v275
    %v308 = vtanh.pop %v276
    %v309 = vtanh.pop %v277
    %v310 = vtanh.pop %v278
    %v311 = vtanh.pop %v279
    %v312 = vtanh.pop %v280
    %v313 = vtanh.pop %v281
    %v314 = vtanh.pop %v282
    %v315 = vtanh.pop %v283
    %v316 = vtanh.pop %v284
    %v317 = vtanh.pop %v285
    %v318 = vtanh.pop %v286
    %v319 = vtanh.pop %v287
    %v320 = vtanh.pop %v288
    %v321 = vtanh.pop %v289
    %v322 = vtanh.pop %v290
    %v323 = vtanh.pop %v291
    %v324 = vtanh.pop %v292
    %v325 = vtanh.pop %v293
    %v326 = vtanh.pop %v294
    %v327 = vtanh.pop %v295
    %v328 = vtanh.pop %v296
    %v329 = vld [vmem:[%s3] sm:$0xff]
    %v330 = vld [vmem:[%s3 + $0x8] sm:$0xff]
    %v331 = vld [vmem:[%s3 + $0x10] sm:$0xff]
    %v332 = vld [vmem:[%s3 + $0x18] sm:$0xff]
    %v333 = vld [vmem:[%s3 + $0x20] sm:$0xff]
    %v334 = vld [vmem:[%s3 + $0x28] sm:$0xff]
    %v335 = vld [vmem:[%s3 + $0x30] sm:$0xff]
    %v336 = vld [vmem:[%s3 + $0x38] sm:$0xff]
    %v337 = vld [vmem:[%s3 + $0x40] sm:$0xff]
    %v338 = vld [vmem:[%s3 + $0x48] sm:$0xff]
    %v339 = vld [vmem:[%s3 + $0x50] sm:$0xff]
    %v340 = vld [vmem:[%s3 + $0x58] sm:$0xff]
    %v341 = vld [vmem:[%s3 + $0x60] sm:$0xff]
    %v342 = vld [vmem:[%s3 + $0x68] sm:$0xff]
    %v343 = vld [vmem:[%s3 + $0x70] sm:$0xff]
    %v344 = vld [vmem:[%s3 + $0x78] sm:$0xff]
    %v345 = vld [vmem:[%s4] sm:$0xff]
    %v346 = vld [vmem:[%s4 + $0x8] sm:$0xff]
    %v347 = vld [vmem:[%s4 + $0x10] sm:$0xff]
    %v348 = vld [vmem:[%s4 + $0x18] sm:$0xff]
    %v349 = vld [vmem:[%s4 + $0x20] sm:$0xff]
    %v350 = vld [vmem:[%s4 + $0x28] sm:$0xff]
    %v351 = vld [vmem:[%s4 + $0x30] sm:$0xff]
    %v352 = vld [vmem:[%s4 + $0x38] sm:$0xff]
    %v353 = vld [vmem:[%s4 + $0x40] sm:$0xff]
    %v354 = vld [vmem:[%s4 + $0x48] sm:$0xff]
    %v355 = vld [vmem:[%s4 + $0x50] sm:$0xff]
    %v356 = vld [vmem:[%s4 + $0x58] sm:$0xff]
    %v357 = vld [vmem:[%s4 + $0x60] sm:$0xff]
    %v358 = vld [vmem:[%s4 + $0x68] sm:$0xff]
    %v359 = vld [vmem:[%s4 + $0x70] sm:$0xff]
    %v360 = vld [vmem:[%s4 + $0x78] sm:$0xff]
    %362 = vset.pattern.permute.xlu0 0
    %363 = vperm.xlu0 %362, %v345
    %v364 = vpop.permute.xlu0 %363
    %367 = vset.pattern.permute.xlu0 0
    %368 = vperm.xlu0 %367, %v346
    %v369 = vpop.permute.xlu0 %368
    %372 = vset.pattern.permute.xlu0 0
    %373 = vperm.xlu0 %372, %v347
    %v374 = vpop.permute.xlu0 %373
    %377 = vset.pattern.permute.xlu0 0
    %378 = vperm.xlu0 %377, %v348
    %v379 = vpop.permute.xlu0 %378
    %382 = vset.pattern.permute.xlu0 0
    %383 = vperm.xlu0 %382, %v349
    %v384 = vpop.permute.xlu0 %383
    %387 = vset.pattern.permute.xlu0 0
    %388 = vperm.xlu0 %387, %v350
    %v389 = vpop.permute.xlu0 %388
    %392 = vset.pattern.permute.xlu0 0
    %393 = vperm.xlu0 %392, %v351
    %v394 = vpop.permute.xlu0 %393
    %397 = vset.pattern.permute.xlu0 0
    %398 = vperm.xlu0 %397, %v352
    %v399 = vpop.permute.xlu0 %398
    %402 = vset.pattern.permute.xlu0 0
    %403 = vperm.xlu0 %402, %v353
    %v404 = vpop.permute.xlu0 %403
    %407 = vset.pattern.permute.xlu0 0
    %408 = vperm.xlu0 %407, %v354
    %v409 = vpop.permute.xlu0 %408
    %412 = vset.pattern.permute.xlu0 0
    %413 = vperm.xlu0 %412, %v355
    %v414 = vpop.permute.xlu0 %413
    %417 = vset.pattern.permute.xlu0 0
    %418 = vperm.xlu0 %417, %v356
    %v419 = vpop.permute.xlu0 %418
    %422 = vset.pattern.permute.xlu0 0
    %423 = vperm.xlu0 %422, %v357
    %v424 = vpop.permute.xlu0 %423
    %427 = vset.pattern.permute.xlu0 0
    %428 = vperm.xlu0 %427, %v358
    %v429 = vpop.permute.xlu0 %428
    %432 = vset.pattern.permute.xlu0 0
    %433 = vperm.xlu0 %432, %v359
    %v434 = vpop.permute.xlu0 %433
    %437 = vset.pattern.permute.xlu0 0
    %438 = vperm.xlu0 %437, %v360
    %v439 = vpop.permute.xlu0 %438
    %441 = vmatprep.subr.mxu0 %v298
    %442 = vmatpush1.msra.mxu0 %v297
    %443 = vmatprep.subr.mxu0 %v300
    %444 = vmatpush1.msra.mxu0 %v299
    %445 = vmatprep.subr.mxu0 %v302
    %446 = vmatpush1.msra.mxu0 %v301
    %447 = vmatprep.subr.mxu0 %v304
    %448 = vmatpush1.msra.mxu0 %v303
    %449 = vmatprep.subr.mxu0 %v306
    %450 = vmatpush1.msra.mxu0 %v305
    %451 = vmatprep.subr.mxu0 %v308
    %452 = vmatpush1.msra.mxu0 %v307
    %453 = vmatprep.subr.mxu0 %v310
    %454 = vmatpush1.msra.mxu0 %v309
    %455 = vmatprep.subr.mxu0 %v312
    %456 = vmatpush1.msra.mxu0 %v311
    %457 = vmatprep.subr.mxu0 %v314
    %458 = vmatpush1.msra.mxu0 %v313
    %459 = vmatprep.subr.mxu0 %v316
    %460 = vmatpush1.msra.mxu0 %v315
    %461 = vmatprep.subr.mxu0 %v318
    %462 = vmatpush1.msra.mxu0 %v317
    %463 = vmatprep.subr.mxu0 %v320
    %464 = vmatpush1.msra.mxu0 %v319
    %465 = vmatprep.subr.mxu0 %v322
    %466 = vmatpush1.msra.mxu0 %v321
    %467 = vmatprep.subr.mxu0 %v324
    %468 = vmatpush1.msra.mxu0 %v323
    %469 = vmatprep.subr.mxu0 %v326
    %470 = vmatpush1.msra.mxu0 %v325
    %471 = vmatprep.subr.mxu0 %v328
    %472 = vmatpush1.msra.mxu0 %v327
    %473 = vmatprep.subr.mxu0 0.0
    %474 = vmatpush1.msra.mxu0 0.0
    %475 = vmatprep.subr.mxu0 0.0
    %476 = vmatpush1.msra.mxu0 0.0
    %477 = vmatprep.subr.mxu0 0.0
    %478 = vmatpush1.msra.mxu0 0.0
    %479 = vmatprep.subr.mxu0 0.0
    %480 = vmatpush1.msra.mxu0 0.0
    %481 = vmatprep.subr.mxu0 0.0
    %482 = vmatpush1.msra.mxu0 0.0
    %483 = vmatprep.subr.mxu0 0.0
    %484 = vmatpush1.msra.mxu0 0.0
    %485 = vmatprep.subr.mxu0 0.0
    %486 = vmatpush1.msra.mxu0 0.0
    %487 = vmatprep.subr.mxu0 0.0
    %488 = vmatpush1.msra.mxu0 0.0
    %489 = vmatprep.subr.mxu0 0.0
    %490 = vmatpush1.msra.mxu0 0.0
    %491 = vmatprep.subr.mxu0 0.0
    %492 = vmatpush1.msra.mxu0 0.0
    %493 = vmatprep.subr.mxu0 0.0
    %494 = vmatpush1.msra.mxu0 0.0
    %495 = vmatprep.subr.mxu0 0.0
    %496 = vmatpush1.msra.mxu0 0.0
    %497 = vmatprep.subr.mxu0 0.0
    %498 = vmatpush1.msra.mxu0 0.0
    %499 = vmatprep.subr.mxu0 0.0
    %500 = vmatpush1.msra.mxu0 0.0
    %501 = vmatprep.subr.mxu0 0.0
    %502 = vmatpush1.msra.mxu0 0.0
    %503 = vmatprep.subr.mxu0 0.0
    %504 = vmatpush1.msra.mxu0 0.0
    %505 = vmatprep.mubr.f32.mxu0 0.0
    %506 = vmatmul.mubr.f32.gmra.mrb[0].mxu0 %v329
    %v507 = vpop.f32.mrb[0].mxu0
    %v508 = vadd.f32 %v364, %v507
    %v509 = vpop.f32.mrb[0].mxu0
    %v510 = vadd.f32 %v364, %v509
    %511 = vmatprep.mubr.f32.mxu0 0.0
    %512 = vmatmul.mubr.f32.gmra.mrb[0].mxu0 %v330
    %v513 = vpop.f32.mrb[0].mxu0
    %v514 = vadd.f32 %v369, %v513
    %v515 = vpop.f32.mrb[0].mxu0
    %v516 = vadd.f32 %v369, %v515
    %517 = vmatprep.mubr.f32.mxu0 0.0
    %518 = vmatmul.mubr.f32.gmra.mrb[0].mxu0 %v331
    %v519 = vpop.f32.mrb[0].mxu0
    %v520 = vadd.f32 %v374, %v519
    %v521 = vpop.f32.mrb[0].mxu0
    %v522 = vadd.f32 %v374, %v521
    %523 = vmatprep.mubr.f32.mxu0 0.0
    %524 = vmatmul.mubr.f32.gmra.mrb[0].mxu0 %v332
    %v525 = vpop.f32.mrb[0].mxu0
    %v526 = vadd.f32 %v379, %v525
    %v527 = vpop.f32.mrb[0].mxu0
    %v528 = vadd.f32 %v379, %v527
    %529 = vmatprep.mubr.f32.mxu0 0.0
    %530 = vmatmul.mubr.f32.gmra.mrb[0].mxu0 %v333
    %v531 = vpop.f32.mrb[0].mxu0
    %v532 = vadd.f32 %v384, %v531
    %v533 = vpop.f32.mrb[0].mxu0
    %v534 = vadd.f32 %v384, %v533
    %535 = vmatprep.mubr.f32.mxu0 0.0
    %536 = vmatmul.mubr.f32.gmra.mrb[0].mxu0 %v334
    %v537 = vpop.f32.mrb[0].mxu0
    %v538 = vadd.f32 %v389, %v537
    %v539 = vpop.f32.mrb[0].mxu0
    %v540 = vadd.f32 %v389, %v539
    %541 = vmatprep.mubr.f32.mxu0 0.0
    %542 = vmatmul.mubr.f32.gmra.mrb[0].mxu0 %v335
    %v543 = vpop.f32.mrb[0].mxu0
    %v544 = vadd.f32 %v394, %v543
    %v545 = vpop.f32.mrb[0].mxu0
    %v546 = vadd.f32 %v394, %v545
    %547 = vmatprep.mubr.f32.mxu0 0.0
    %548 = vmatmul.mubr.f32.gmra.mrb[0].mxu0 %v336
    %v549 = vpop.f32.mrb[0].mxu0
    %v550 = vadd.f32 %v399, %v549
    %v551 = vpop.f32.mrb[0].mxu0
    %v552 = vadd.f32 %v399, %v551
    %553 = vmatprep.mubr.f32.mxu0 0.0
    %554 = vmatmul.mubr.f32.gmra.mrb[0].mxu0 %v337
    %v555 = vpop.f32.mrb[0].mxu0
    %v556 = vadd.f32 %v404, %v555
    %v557 = vpop.f32.mrb[0].mxu0
    %v558 = vadd.f32 %v404, %v557
    %559 = vmatprep.mubr.f32.mxu0 0.0
    %560 = vmatmul.mubr.f32.gmra.mrb[0].mxu0 %v338
    %v561 = vpop.f32.mrb[0].mxu0
    %v562 = vadd.f32 %v409, %v561
    %v563 = vpop.f32.mrb[0].mxu0
    %v564 = vadd.f32 %v409, %v563
    %565 = vmatprep.mubr.f32.mxu0 0.0
    %566 = vmatmul.mubr.f32.gmra.mrb[0].mxu0 %v339
    %v567 = vpop.f32.mrb[0].mxu0
    %v568 = vadd.f32 %v414, %v567
    %v569 = vpop.f32.mrb[0].mxu0
    %v570 = vadd.f32 %v414, %v569
    %571 = vmatprep.mubr.f32.mxu0 0.0
    %572 = vmatmul.mubr.f32.gmra.mrb[0].mxu0 %v340
    %v573 = vpop.f32.mrb[0].mxu0
    %v574 = vadd.f32 %v419, %v573
    %v575 = vpop.f32.mrb[0].mxu0
    %v576 = vadd.f32 %v419, %v575
    %577 = vmatprep.mubr.f32.mxu0 0.0
    %578 = vmatmul.mubr.f32.gmra.mrb[0].mxu0 %v341
    %v579 = vpop.f32.mrb[0].mxu0
    %v580 = vadd.f32 %v424, %v579
    %v581 = vpop.f32.mrb[0].mxu0
    %v582 = vadd.f32 %v424, %v581
    %583 = vmatprep.mubr.f32.mxu0 0.0
    %584 = vmatmul.mubr.f32.gmra.mrb[0].mxu0 %v342
    %v585 = vpop.f32.mrb[0].mxu0
    %v586 = vadd.f32 %v429, %v585
    %v587 = vpop.f32.mrb[0].mxu0
    %v588 = vadd.f32 %v429, %v587
    %589 = vmatprep.mubr.f32.mxu0 0.0
    %590 = vmatmul.mubr.f32.gmra.mrb[0].mxu0 %v343
    %v591 = vpop.f32.mrb[0].mxu0
    %v592 = vadd.f32 %v434, %v591
    %v593 = vpop.f32.mrb[0].mxu0
    %v594 = vadd.f32 %v434, %v593
    %595 = vmatprep.mubr.f32.mxu0 0.0
    %596 = vmatmul.mubr.f32.gmra.mrb[0].mxu0 %v344
    %v597 = vpop.f32.mrb[0].mxu0
    %v598 = vadd.f32 %v439, %v597
    %v599 = vpop.f32.mrb[0].mxu0
    %v600 = vadd.f32 %v439, %v599
    %601 = vdwg.mxu0
    %v602 = vtanh.pop %v508
    %v603 = vtanh.pop %v510
    %v604 = vtanh.pop %v514
    %v605 = vtanh.pop %v516
    %v606 = vtanh.pop %v520
    %v607 = vtanh.pop %v522
    %v608 = vtanh.pop %v526
    %v609 = vtanh.pop %v528
    %v610 = vtanh.pop %v532
    %v611 = vtanh.pop %v534
    %v612 = vtanh.pop %v538
    %v613 = vtanh.pop %v540
    %v614 = vtanh.pop %v544
    %v615 = vtanh.pop %v546
    %v616 = vtanh.pop %v550
    %v617 = vtanh.pop %v552
    %v618 = vtanh.pop %v556
    %v619 = vtanh.pop %v558
    %v620 = vtanh.pop %v562
    %v621 = vtanh.pop %v564
    %v622 = vtanh.pop %v568
    %v623 = vtanh.pop %v570
    %v624 = vtanh.pop %v574
    %v625 = vtanh.pop %v576
    %v626 = vtanh.pop %v580
    %v627 = vtanh.pop %v582
    %v628 = vtanh.pop %v586
    %v629 = vtanh.pop %v588
    %v630 = vtanh.pop %v592
    %v631 = vtanh.pop %v594
    %v632 = vtanh.pop %v598
    %v633 = vtanh.pop %v600
    %v634 = vld [vmem:[%s5] sm:$0xff]
    %v635 = vld [vmem:[%s5 + $0x8] sm:$0xff]
    %v636 = vld [vmem:[%s5 + $0x10] sm:$0xff]
    %v637 = vld [vmem:[%s5 + $0x18] sm:$0xff]
    %v638 = vld [vmem:[%s5 + $0x20] sm:$0xff]
    %v639 = vld [vmem:[%s5 + $0x28] sm:$0xff]
    %v640 = vld [vmem:[%s5 + $0x30] sm:$0xff]
    %v641 = vld [vmem:[%s5 + $0x38] sm:$0xff]
    %v642 = vld [vmem:[%s5 + $0x40] sm:$0xff]
    %v643 = vld [vmem:[%s5 + $0x48] sm:$0xff]
    %v644 = vld [vmem:[%s5 + $0x50] sm:$0xff]
    %v645 = vld [vmem:[%s5 + $0x58] sm:$0xff]
    %v646 = vld [vmem:[%s5 + $0x60] sm:$0xff]
    %v647 = vld [vmem:[%s5 + $0x68] sm:$0xff]
    %v648 = vld [vmem:[%s5 + $0x70] sm:$0xff]
    %v649 = vld [vmem:[%s5 + $0x78] sm:$0xff]
    %651 = vset.pattern.permute.xlu0 0
    %652 = vperm.xlu0 %651, %v634
    %v653 = vpop.permute.xlu0 %652
    %656 = vset.pattern.permute.xlu0 0
    %657 = vperm.xlu0 %656, %v635
    %v658 = vpop.permute.xlu0 %657
    %661 = vset.pattern.permute.xlu0 0
    %662 = vperm.xlu0 %661, %v636
    %v663 = vpop.permute.xlu0 %662
    %666 = vset.pattern.permute.xlu0 0
    %667 = vperm.xlu0 %666, %v637
    %v668 = vpop.permute.xlu0 %667
    %671 = vset.pattern.permute.xlu0 0
    %672 = vperm.xlu0 %671, %v638
    %v673 = vpop.permute.xlu0 %672
    %676 = vset.pattern.permute.xlu0 0
    %677 = vperm.xlu0 %676, %v639
    %v678 = vpop.permute.xlu0 %677
    %681 = vset.pattern.permute.xlu0 0
    %682 = vperm.xlu0 %681, %v640
    %v683 = vpop.permute.xlu0 %682
    %686 = vset.pattern.permute.xlu0 0
    %687 = vperm.xlu0 %686, %v641
    %v688 = vpop.permute.xlu0 %687
    %691 = vset.pattern.permute.xlu0 0
    %692 = vperm.xlu0 %691, %v642
    %v693 = vpop.permute.xlu0 %692
    %696 = vset.pattern.permute.xlu0 0
    %697 = vperm.xlu0 %696, %v643
    %v698 = vpop.permute.xlu0 %697
    %701 = vset.pattern.permute.xlu0 0
    %702 = vperm.xlu0 %701, %v644
    %v703 = vpop.permute.xlu0 %702
    %706 = vset.pattern.permute.xlu0 0
    %707 = vperm.xlu0 %706, %v645
    %v708 = vpop.permute.xlu0 %707
    %711 = vset.pattern.permute.xlu0 0
    %712 = vperm.xlu0 %711, %v646
    %v713 = vpop.permute.xlu0 %712
    %716 = vset.pattern.permute.xlu0 0
    %717 = vperm.xlu0 %716, %v647
    %v718 = vpop.permute.xlu0 %717
    %721 = vset.pattern.permute.xlu0 0
    %722 = vperm.xlu0 %721, %v648
    %v723 = vpop.permute.xlu0 %722
    %726 = vset.pattern.permute.xlu0 0
    %727 = vperm.xlu0 %726, %v649
    %v728 = vpop.permute.xlu0 %727
    %v730 = vmul.f32 %v602, %v653
    %v731 = vmul.f32 %v603, %v653
    %v732 = vmul.f32 %v604, %v658
    %v733 = vmul.f32 %v605, %v658
    %v734 = vmul.f32 %v606, %v663
    %v735 = vmul.f32 %v607, %v663
    %v736 = vmul.f32 %v608, %v668
    %v737 = vmul.f32 %v609, %v668
    %v738 = vmul.f32 %v610, %v673
    %v739 = vmul.f32 %v611, %v673
    %v740 = vmul.f32 %v612, %v678
    %v741 = vmul.f32 %v613, %v678
    %v742 = vmul.f32 %v614, %v683
    %v743 = vmul.f32 %v615, %v683
    %v744 = vmul.f32 %v616, %v688
    %v745 = vmul.f32 %v617, %v688
    %v746 = vmul.f32 %v618, %v693
    %v747 = vmul.f32 %v619, %v693
    %v748 = vmul.f32 %v620, %v698
    %v749 = vmul.f32 %v621, %v698
    %v750 = vmul.f32 %v622, %v703
    %v751 = vmul.f32 %v623, %v703
    %v752 = vmul.f32 %v624, %v708
    %v753 = vmul.f32 %v625, %v708
    %v754 = vmul.f32 %v626, %v713
    %v755 = vmul.f32 %v627, %v713
    %v756 = vmul.f32 %v628, %v718
    %v757 = vmul.f32 %v629, %v718
    %v758 = vmul.f32 %v630, %v723
    %v759 = vmul.f32 %v631, %v723
    %v760 = vmul.f32 %v632, %v728
    %v761 = vmul.f32 %v633, %v728
    %v762 = vadd.f32 %v730, %v732
    %v763 = vadd.f32 %v762, %v734
    %v764 = vadd.f32 %v763, %v736
    %v765 = vadd.f32 %v764, %v738
    %v766 = vadd.f32 %v765, %v740
    %v767 = vadd.f32 %v766, %v742
    %v768 = vadd.f32 %v767, %v744
    %v769 = vadd.f32 %v768, %v746
    %v770 = vadd.f32 %v769, %v748
    %v771 = vadd.f32 %v770, %v750
    %v772 = vadd.f32 %v771, %v752
    %v773 = vadd.f32 %v772, %v754
    %v774 = vadd.f32 %v773, %v756
    %v775 = vadd.f32 %v774, %v758
    %v776 = vadd.f32 %v775, %v760
    %v777 = vrot.slane %v776, 4
    %v778 = vadd.f32 %v776, %v777
    %v779 = vrot.slane %v778, 2
    %v780 = vadd.f32 %v778, %v779
    %v781 = vrot.slane %v780, 1
    %v782 = vadd.f32 %v780, %v781
    %v783 = vadd.f32 %v731, %v733
    %v784 = vadd.f32 %v783, %v735
    %v785 = vadd.f32 %v784, %v737
    %v786 = vadd.f32 %v785, %v739
    %v787 = vadd.f32 %v786, %v741
    %v788 = vadd.f32 %v787, %v743
    %v789 = vadd.f32 %v788, %v745
    %v790 = vadd.f32 %v789, %v747
    %v791 = vadd.f32 %v790, %v749
    %v792 = vadd.f32 %v791, %v751
    %v793 = vadd.f32 %v792, %v753
    %v794 = vadd.f32 %v793, %v755
    %v795 = vadd.f32 %v794, %v757
    %v796 = vadd.f32 %v795, %v759
    %v797 = vadd.f32 %v796, %v761
    %v798 = vrot.slane %v797, 4
    %v799 = vadd.f32 %v797, %v798
    %v800 = vrot.slane %v799, 2
    %v801 = vadd.f32 %v799, %v800
    %v802 = vrot.slane %v801, 1
    %v803 = vadd.f32 %v801, %v802
    %v804 = vld [vmem:[#allocation2] sm:$0x1]
    %806 = vset.pattern.permute.xlu0 0
    %807 = vperm.xlu0 %806, %v804
    %v808 = vpop.permute.xlu0 %807
    %v810 = vlaneseq
    %v811 = vshrl.u32 %v810, 7
    %v812 = vsub.s32 0, %v811
    %v813 = vrot.slane %v808, %v812
    %v814 = vadd.f32 %v782, %v813
    %v815 = vadd.f32 %v803, %v813
    %v818 = vcombine.low %v814, %v815
    %v820 = vunpack.c.l.s4 1966171168
    %v821 = vunpack.c.0.s8 %v820
    %v822 = vlaneseq
    %v823 = vshrl.u32 %v822, 7
    %v824 = vsub.s32 %v821, %v823
    %v825 = vrot.slane %v818, %v824
    %v827 = vunpack.c.l.s4 1966171168
    %v828 = vunpack.c.0.s8 %v827
    %v829 = vlaneseq
    %v830 = vshrl.u32 %v829, 7
    %v831 = vsub.s32 %v828, %v830
    %v832 = vrot.slane %v825, %v831
    %v834 = vlaneseq
    %vm835 = vcmp.ge.s32.totalorder %v834, 0
    %vm836 = vcmp.lt.s32.totalorder %v834, 256
    %vm837 = vmand %vm835, %vm836
    %838 = vst.msk [vmem:[#allocation3] sm:$0x3] %vm837, %v832
    // Predicated region
    $region30: #{tpu_custom_call.1} parent=1 // pred_check
      _
    $region31: #{tpu_custom_call.1} parent=1 // pred_check_branch
      %840 = sbr.rel (0) target = $region33
    $region32: #{tpu_custom_call.1} parent=1 // pred_region
      %s842 = ssub.s32 32, 32
      %843 = vsyncadd [#allocation4], %s842
      %s845 = sshll.u32 [#allocation3], 4
      %s846 = int_to_ptr.vmem [resolvable:$true] %s845
      %848 = dma.vmem_to_hbm [thread:$0]  %s846, 32, %s7, [#allocation4]
    $region33: #{tpu_custom_call.1} parent=1 // pred_fallthru
      _
    // Predicated region
    $region34: #{tpu_custom_call.1} parent=1 // pred_check
      _
    $region35: #{tpu_custom_call.1} parent=1 // pred_check_branch
      %850 = sbr.rel (0) target = $region37
    $region36: #{tpu_custom_call.1} parent=1 // pred_region
      %851 = dma.done [#allocation4], 32
    $region37: #{tpu_custom_call.1} parent=1 // pred_fallthru
      _
    %852 = vsyncpa [#allocation4], 1

</llo_original>
